<compile_context>
chip_gen: v5e
topology: v5e:2x2
jax: 0.10.0
libtpu: 0.0.40
codegen_flags: <defaults>
</compile_context>

<pallas_src>
import functools
import math

import jax
import jax.numpy as jnp
from jax.experimental import pallas as pl
from jax.experimental.pallas import tpu as pltpu


def _channel_attention_kernel(x_ref, w1_ref, w2_ref, o_ref, max_acc, sum_acc,
                              *, hw_total, tile_hw, mask_tail):
    # x_ref  : (tile_n, C, tile_hw)  input dtype (streamed as-is)
    # w1_ref : (C, hidden)  f32      (pre-transposed first 1x1-conv weight)
    # w2_ref : (hidden, C)  f32      (pre-transposed second 1x1-conv weight)
    # o_ref  : (tile_n, 1, C)        x dtype
    k = pl.program_id(1)
    nk = pl.num_programs(1)

    @pl.when(k == 0)
    def _init():
        max_acc[...] = jnp.full_like(max_acc, -jnp.inf)
        sum_acc[...] = jnp.zeros_like(sum_acc)

    x = x_ref[...].astype(jnp.float32)                 # (tile_n, C, tile_hw)

    def _accumulate(x_for_max, x_for_sum):
        max_acc[...] = jnp.maximum(max_acc[...], jnp.max(x_for_max, axis=-1))
        sum_acc[...] = sum_acc[...] + jnp.sum(x_for_sum, axis=-1)

    if mask_tail:
        # Only the final HW chunk straddles the array boundary -> keep the
        # per-element selects off the hot (full-chunk) path.
        @pl.when(k != nk - 1)
        def _full_chunk():
            _accumulate(x, x)

        @pl.when(k == nk - 1)
        def _tail_chunk():
            pos = (jax.lax.broadcasted_iota(jnp.int32, (1, 1, tile_hw), 2)
                   + k * tile_hw)
            valid = pos < hw_total
            _accumulate(jnp.where(valid, x, -jnp.inf),
                        jnp.where(valid, x, 0.0))
    else:
        _accumulate(x, x)

    @pl.when(k == nk - 1)
    def _epilogue():
        w1 = w1_ref[...]                               # (C, hidden)
        w2 = w2_ref[...]                               # (hidden, C)
        avg_pool = sum_acc[...] * (1.0 / float(hw_total))
        max_pool = max_acc[...]

        def fc(v):                                     # 1x1 convs == dense on (tile_n, C)
            h = jnp.maximum(
                jnp.dot(v, w1, preferred_element_type=jnp.float32), 0.0)
            return jnp.dot(h, w2, preferred_element_type=jnp.float32)

        out = jax.nn.sigmoid(fc(avg_pool) + fc(max_pool))   # (tile_n, C)
        o_ref[...] = out[:, None, :].astype(o_ref.dtype)


def channel_attention_forward(x_nchw, w1, w2, *, tile_hw=None, tile_n=None,
                              vmem_budget_bytes=8 * 1024 * 1024):
    """ChannelAttention forward.

    x_nchw : (N, C, H, W)          any float dtype (streamed without upcast)
    w1     : (C // ratio, C)       squeezed PyTorch weight of Conv2d(C, C//ratio, 1)
    w2     : (C, C // ratio)       squeezed PyTorch weight of Conv2d(C//ratio, C, 1)
    Returns (N, C, 1, 1) attention map in x's dtype.
    """
    n, c, h, w = x_nchw.shape
    hidden = w1.shape[0]
    assert w1.shape == (hidden, c) and w2.shape == (c, hidden)

    hw = h * w
    x3 = x_nchw.reshape(n, c, hw)
    itemsize = jnp.dtype(x3.dtype).itemsize

    # --- batch tiling (leading "parallel" grid axis for megacore) ----------
    if tile_n is None:
        tile_n = n if n <= 8 else (8 if n % 8 == 0 else 1)
    assert n % tile_n == 0
    num_n = n // tile_n

    # --- spatial (lane) tiling: multiple of 128, sized to a VMEM budget ----
    if tile_hw is None:
        per_lane_bytes = max(1, tile_n * c * itemsize * 2)   # double-buffered
        tile_hw = (vmem_budget_bytes // per_lane_bytes) // 128 * 128
        tile_hw = int(max(128, min(2048, tile_hw)))
    if hw <= tile_hw:
        tile_hw_eff = hw                                      # full extent
    else:
        tile_hw_eff = max(128, (tile_hw // 128) * 128)        # lane-aligned
    num_hw = pl.cdiv(hw, tile_hw_eff)
    mask_tail = (hw % tile_hw_eff) != 0

    # Weights pre-transposed to (in, out) in the wrapper -> no in-kernel .T.
    w1t = jnp.asarray(w1).T.astype(jnp.float32)        # (C, hidden)
    w2t = jnp.asarray(w2).T.astype(jnp.float32)        # (hidden, C)

    kernel = functools.partial(
        _channel_attention_kernel,
        hw_total=hw, tile_hw=tile_hw_eff, mask_tail=mask_tail)

    out = pl.pallas_call(
        kernel,
        out_shape=jax.ShapeDtypeStruct((n, 1, c), x_nchw.dtype),
        grid_spec=pltpu.PrefetchScalarGridSpec(
            num_scalar_prefetch=0,
            grid=(num_n, num_hw),
            in_specs=[
                pl.BlockSpec((tile_n, c, tile_hw_eff), lambda i, k: (i, 0, k)),
                pl.BlockSpec((c, hidden), lambda i, k: (0, 0)),
                pl.BlockSpec((hidden, c), lambda i, k: (0, 0)),
            ],
            out_specs=pl.BlockSpec((tile_n, 1, c), lambda i, k: (i, 0, 0)),
            scratch_shapes=[
                pltpu.VMEM((tile_n, c), jnp.float32),   # running max
                pltpu.VMEM((tile_n, c), jnp.float32),   # running sum
            ],
        ),
        compiler_params=pltpu.CompilerParams(
            dimension_semantics=("parallel", "arbitrary")),
    )(x3, w1t, w2t)

    return out.reshape(n, c, 1, 1)


def _reference(x_nchw, w1, w2):
    avg = jnp.mean(x_nchw.astype(jnp.float32), axis=(2, 3))   # (N, C)
    mx = jnp.max(x_nchw.astype(jnp.float32), axis=(2, 3))     # (N, C)

    def fc(v):
        h = jnp.maximum(v @ w1.T, 0.0)                        # (N, hidden)
        return h @ w2.T                                       # (N, C)

    out = jax.nn.sigmoid(fc(avg) + fc(mx))
    return out.reshape(x_nchw.shape[0], x_nchw.shape[1], 1, 1)


if __name__ == "__main__":
    key = jax.random.PRNGKey(0)
    kx, k1, k2 = jax.random.split(key, 3)

    # ChannelAttention(in_planes=64, ratio=16): fc = Conv(64->4) -> ReLU -> Conv(4->64)
    N, C, H, W = 2, 64, 24, 24
    RATIO = 16
    HIDDEN = C // RATIO

    x = jax.random.normal(kx, (N, C, H, W), dtype=jnp.float32)

    bound1 = 1.0 / math.sqrt(C)
    bound2 = 1.0 / math.sqrt(HIDDEN)
    w1 = jax.random.uniform(k1, (HIDDEN, C), jnp.float32, -bound1, bound1)
    w2 = jax.random.uniform(k2, (C, HIDDEN), jnp.float32, -bound2, bound2)

    ref = _reference(x, w1, w2)

    # 1) Default auto-tiling: H*W = 576 fits in one chunk (no masking path).
    out_single = channel_attention_forward(x, w1, w2)
    out_single = jax.block_until_ready(out_single)
    assert out_single.shape == (N, C, 1, 1)
    assert jnp.allclose(out_single, ref, atol=1e-5, rtol=1e-5), \
        "single-chunk mismatch vs reference"

    # 2) tile_hw=256 forces a multi-chunk reduction grid with a masked tail
    #    (576 = 2*256 + 64), exercising the pipelined accumulate path.
    out_tiled = channel_attention_forward(x, w1, w2, tile_hw=256)
    out_tiled = jax.block_until_ready(out_tiled)
    assert out_tiled.shape == (N, C, 1, 1)
    assert jnp.allclose(out_tiled, ref, atol=1e-5, rtol=1e-5), \
        "tiled mismatch vs reference"

    print("KERNEL_OK")
</pallas_src>

<mosaic_0001>
module attributes {stable_mosaic.version = 11 : i64} {
  func.func @_channel_attention_kernel(%arg0: i32, %arg1: i32, %arg2: memref<2x64x576xf32, #tpu.memory_space<vmem>>, %arg3: memref<64x4xf32, #tpu.memory_space<vmem>>, %arg4: memref<4x64xf32, #tpu.memory_space<vmem>>, %arg5: memref<2x1x64xf32, #tpu.memory_space<vmem>>, %arg6: memref<2x64xf32, #tpu.memory_space<vmem>>, %arg7: memref<2x64xf32, #tpu.memory_space<vmem>>) attributes {dimension_semantics = [#tpu.dimension_semantics<parallel>, #tpu.dimension_semantics<arbitrary>], iteration_bounds = array<i64: 1, 1>, scalar_prefetch = 0 : i64, scratch_operands = 2 : i64, tpu.core_type = #tpu.core_type<tc>, window_params = [{transform_indices = @transform_0, window_bounds = array<i64: 2, 64, 576>}, {pipeline_mode = #tpu.pipeline_mode<synchronous>, transform_indices = @transform_1, window_bounds = array<i64: 64, 4>}, {pipeline_mode = #tpu.pipeline_mode<synchronous>, transform_indices = @transform_2, window_bounds = array<i64: 4, 64>}, {transform_indices = @transform_3, window_bounds = array<i64: 2, 1, 64>}]} {
    %c0_i32 = arith.constant 0 : i32
    %0 = arith.cmpi eq, %arg1, %c0_i32 : i32
    %1 = arith.extui %0 : i1 to i32
    %c0_i32_0 = arith.constant 0 : i32
    %2 = arith.cmpi ne, %1, %c0_i32_0 : i32
    scf.if %2 {
      %cst_14 = arith.constant 0xFF800000 : f32
      %15 = vector.broadcast %cst_14 : f32 to vector<2x64xf32>
      %c0_15 = arith.constant 0 : index
      %c0_16 = arith.constant 0 : index
      %16 = vector.load %arg6[%c0_15, %c0_16] : memref<2x64xf32, #tpu.memory_space<vmem>>, vector<2x64xf32>
      tpu.vector_store %arg6[%c0_15, %c0_16], %15 {strides = array<i32>} : memref<2x64xf32, #tpu.memory_space<vmem>>, vector<2x64xf32>,
      %cst_17 = arith.constant 0.000000e+00 : f32
      %17 = vector.broadcast %cst_17 : f32 to vector<2x64xf32>
      %c0_18 = arith.constant 0 : index
      %c0_19 = arith.constant 0 : index
      %18 = vector.load %arg7[%c0_18, %c0_19] : memref<2x64xf32, #tpu.memory_space<vmem>>, vector<2x64xf32>
      tpu.vector_store %arg7[%c0_18, %c0_19], %17 {strides = array<i32>} : memref<2x64xf32, #tpu.memory_space<vmem>>, vector<2x64xf32>,
    } else {
    }
    %c0 = arith.constant 0 : index
    %c0_1 = arith.constant 0 : index
    %c0_2 = arith.constant 0 : index
    %3 = vector.load %arg2[%c0, %c0_1, %c0_2] : memref<2x64x576xf32, #tpu.memory_space<vmem>>, vector<2x64x576xf32>
    %c0_3 = arith.constant 0 : index
    %c0_4 = arith.constant 0 : index
    %4 = vector.load %arg6[%c0_3, %c0_4] : memref<2x64xf32, #tpu.memory_space<vmem>>, vector<2x64xf32>
    %cst = arith.constant dense<0xFF800000> : vector<2x64xf32>
    %5 = vector.multi_reduction <maximumf>, %3, %cst [2] : vector<2x64x576xf32> to vector<2x64xf32>
    %6 = arith.maximumf %4, %5 : vector<2x64xf32>
    %c0_5 = arith.constant 0 : index
    %c0_6 = arith.constant 0 : index
    %7 = vector.load %arg6[%c0_5, %c0_6] : memref<2x64xf32, #tpu.memory_space<vmem>>, vector<2x64xf32>
    tpu.vector_store %arg6[%c0_5, %c0_6], %6 {strides = array<i32>} : memref<2x64xf32, #tpu.memory_space<vmem>>, vector<2x64xf32>,
    %c0_7 = arith.constant 0 : index
    %c0_8 = arith.constant 0 : index
    %8 = vector.load %arg7[%c0_7, %c0_8] : memref<2x64xf32, #tpu.memory_space<vmem>>, vector<2x64xf32>
    %cst_9 = arith.constant dense<0.000000e+00> : vector<2x64xf32>
    %9 = vector.multi_reduction <add>, %3, %cst_9 [2] : vector<2x64x576xf32> to vector<2x64xf32>
    %10 = arith.addf %8, %9 : vector<2x64xf32>
    %c0_10 = arith.constant 0 : index
    %c0_11 = arith.constant 0 : index
    %11 = vector.load %arg7[%c0_10, %c0_11] : memref<2x64xf32, #tpu.memory_space<vmem>>, vector<2x64xf32>
    tpu.vector_store %arg7[%c0_10, %c0_11], %10 {strides = array<i32>} : memref<2x64xf32, #tpu.memory_space<vmem>>, vector<2x64xf32>,
    %c0_i32_12 = arith.constant 0 : i32
    %12 = arith.cmpi eq, %arg1, %c0_i32_12 : i32
    %13 = arith.extui %12 : i1 to i32
    %c0_i32_13 = arith.constant 0 : i32
    %14 = arith.cmpi ne, %13, %c0_i32_13 : i32
    scf.if %14 {
      %c0_14 = arith.constant 0 : index
      %c0_15 = arith.constant 0 : index
      %15 = vector.load %arg3[%c0_14, %c0_15] : memref<64x4xf32, #tpu.memory_space<vmem>>, vector<64x4xf32>
      %c0_16 = arith.constant 0 : index
      %c0_17 = arith.constant 0 : index
      %16 = vector.load %arg4[%c0_16, %c0_17] : memref<4x64xf32, #tpu.memory_space<vmem>>, vector<4x64xf32>
      %c0_18 = arith.constant 0 : index
      %c0_19 = arith.constant 0 : index
      %17 = vector.load %arg7[%c0_18, %c0_19] : memref<2x64xf32, #tpu.memory_space<vmem>>, vector<2x64xf32>
      %cst_20 = arith.constant 0.00173611112 : f32
      %18 = vector.broadcast %cst_20 : f32 to vector<2x64xf32>
      %19 = arith.mulf %17, %18 : vector<2x64xf32>
      %c0_21 = arith.constant 0 : index
      %c0_22 = arith.constant 0 : index
      %20 = vector.load %arg6[%c0_21, %c0_22] : memref<2x64xf32, #tpu.memory_space<vmem>>, vector<2x64xf32>
      %cst_23 = arith.constant dense<0.000000e+00> : vector<2x4xf32>
      %21 = tpu.matmul %19, %15, %cst_23 {dimension_numbers = #tpu.dot_dimension_numbers<[1], [0], [0], [1], [0, 0, 1, 1], [], []>} : vector<2x64xf32>, vector<64x4xf32>, vector<2x4xf32> -> vector<2x4xf32>
      %cst_24 = arith.constant 0.000000e+00 : f32
      %22 = vector.broadcast %cst_24 : f32 to vector<2x4xf32>
      %23 = arith.maximumf %21, %22 : vector<2x4xf32>
      %cst_25 = arith.constant dense<0.000000e+00> : vector<2x64xf32>
      %24 = tpu.matmul %23, %16, %cst_25 {dimension_numbers = #tpu.dot_dimension_numbers<[1], [0], [0], [1], [0, 0, 1, 1], [], []>} : vector<2x4xf32>, vector<4x64xf32>, vector<2x64xf32> -> vector<2x64xf32>
      %cst_26 = arith.constant dense<0.000000e+00> : vector<2x4xf32>
      %25 = tpu.matmul %20, %15, %cst_26 {dimension_numbers = #tpu.dot_dimension_numbers<[1], [0], [0], [1], [0, 0, 1, 1], [], []>} : vector<2x64xf32>, vector<64x4xf32>, vector<2x4xf32> -> vector<2x4xf32>
      %cst_27 = arith.constant 0.000000e+00 : f32
      %26 = vector.broadcast %cst_27 : f32 to vector<2x4xf32>
      %27 = arith.maximumf %25, %26 : vector<2x4xf32>
      %cst_28 = arith.constant dense<0.000000e+00> : vector<2x64xf32>
      %28 = tpu.matmul %27, %16, %cst_28 {dimension_numbers = #tpu.dot_dimension_numbers<[1], [0], [0], [1], [0, 0, 1, 1], [], []>} : vector<2x4xf32>, vector<4x64xf32>, vector<2x64xf32> -> vector<2x64xf32>
      %29 = arith.addf %24, %28 : vector<2x64xf32>
      %30 = arith.negf %29 : vector<2x64xf32>
      %31 = math.exp %30 : vector<2x64xf32>
      %cst_29 = arith.constant 1.000000e+00 : f32
      %32 = vector.broadcast %cst_29 : f32 to vector<2x64xf32>
      %33 = arith.addf %32, %31 : vector<2x64xf32>
      %34 = arith.divf %32, %33 : vector<2x64xf32>
      %35 = vector.shape_cast %34 : vector<2x64xf32> to vector<2x1x64xf32>
      %c0_30 = arith.constant 0 : index
      %c0_31 = arith.constant 0 : index
      %c0_32 = arith.constant 0 : index
      %36 = vector.load %arg5[%c0_30, %c0_31, %c0_32] : memref<2x1x64xf32, #tpu.memory_space<vmem>>, vector<2x1x64xf32>
      tpu.vector_store %arg5[%c0_30, %c0_31, %c0_32], %35 {strides = array<i32>} : memref<2x1x64xf32, #tpu.memory_space<vmem>>, vector<2x1x64xf32>,
    } else {
    }
    return
  }
  func.func @transform_0(%arg0: i32, %arg1: i32) -> (i32, i32, i32) {
    %c0_i32 = arith.constant 0 : i32
    %c0_i32_0 = arith.constant 0 : i32
    return %arg0, %c0_i32, %arg1 : i32, i32, i32
  }
  func.func @transform_1(%arg0: i32, %arg1: i32) -> (i32, i32) {
    %c0_i32 = arith.constant 0 : i32
    %c0_i32_0 = arith.constant 0 : i32
    %c0_i32_1 = arith.constant 0 : i32
    return %c0_i32, %c0_i32_0 : i32, i32
  }
  func.func @transform_2(%arg0: i32, %arg1: i32) -> (i32, i32) {
    %c0_i32 = arith.constant 0 : i32
    %c0_i32_0 = arith.constant 0 : i32
    %c0_i32_1 = arith.constant 0 : i32
    return %c0_i32, %c0_i32_0 : i32, i32
  }
  func.func @transform_3(%arg0: i32, %arg1: i32) -> (i32, i32, i32) {
    %c0_i32 = arith.constant 0 : i32
    %c0_i32_0 = arith.constant 0 : i32
    %c0_i32_1 = arith.constant 0 : i32
    return %arg0, %c0_i32, %c0_i32_0 : i32, i32, i32
  }
}

</mosaic_0001>

<llo_original>
// kernel: tpu_custom_call.1
$region0: #{tpu_custom_call.1}
  #allocation0 [shape = 'u32[]', space=smem, size = 0x4, offset = 0x4, fixed_abs, tag = 'smem constant byte address 0x4 - core index']
  #allocation1 [shape = 'u32[72,128]{1,0:T(1,128)}', space=vmem, size = 0x9000, scoped, tag = 'internal scratch']
  #allocation2 [shape = 'f32[2,64]{1,0:T(2,128)}', space=vmem, size = 0x400, scoped, tag = 'scratch operand']
  #allocation3 [shape = 'f32[2,64]{1,0:T(2,128)}', space=vmem, size = 0x400, scoped, tag = 'scratch operand']
  %s0 = inlined_call_operand.hbm [shape: f32[2,64,576], index: 0, kind: input, shape index: {}]
  %s1 = inlined_call_operand.vmem [shape: f32[64,4], index: 1, kind: input, shape index: {}]
  %s2 = inlined_call_operand.vmem [shape: f32[4,64], index: 2, kind: input, shape index: {}]
  %s3 = inlined_call_operand.hbm [shape: f32[2,1,64], index: 3, kind: output, shape index: {}]
  %s4 = sld [smem:[#allocation0]]
  $region34: #{tpu_custom_call.1} parent=0
    _
  %s6 = ssub.s32 1, %s4
  %s7 = scalar_select 0, %s6, %s4
  $region1: #{tpu_custom_call.1} parent=0
    #allocation4 [shape = 'u8[327680]{0}', space=vmem, size = 0x50000, scoped, tag = 'input window, operand 0, single buffered']
    #allocation5 [shape = 's32[1]{0}', space=sflag, size = 0x4, scoped, tag = 'scoped memory for tpu_custom_call.1']
    #allocation6 [shape = 's32[1]{0}', space=sflag, size = 0x4, scoped, tag = 'scoped memory for tpu_custom_call.1']
    #allocation7 [shape = 'u8[1024]{0}', space=vmem, size = 0x400, scoped, tag = 'output window, operand 0, single buffered']
    %8 = vsyncpa [#allocation5], 0
    %9 = vsyncpa [#allocation6], 0
    // Predicated region
    $region2: #{tpu_custom_call.1} parent=1 // pred_check
      _
    $region3: #{tpu_custom_call.1} parent=1 // pred_check_branch
      %11 = sbr.rel (0) target = $region5
    $region4: #{tpu_custom_call.1} parent=1 // pred_region
      %13 = vsyncadd [#allocation5], 0
      %s14 = sshll.u32 %s0, 4
      %s15 = int_to_ptr.hbm [resolvable:$true] %s14
      %s16 = sshll.u32 [#allocation4], 4
      %s17 = int_to_ptr.vmem [resolvable:$true] %s16
      %22 = dma.hbm_to_vmem [thread:$0]  %s15, 10240, %s17, [#allocation5], 640, 640, 40
    $region5: #{tpu_custom_call.1} parent=1 // pred_fallthru
      _
    // Predicated region
    $region6: #{tpu_custom_call.1} parent=1 // pred_check
      _
    $region7: #{tpu_custom_call.1} parent=1 // pred_check_branch
      %24 = sbr.rel (0) target = $region9
    $region8: #{tpu_custom_call.1} parent=1 // pred_region
      _
    $region9: #{tpu_custom_call.1} parent=1 // pred_fallthru
      _
    // Predicated region
    $region10: #{tpu_custom_call.1} parent=1 // pred_check
      _
    $region11: #{tpu_custom_call.1} parent=1 // pred_check_branch
      %26 = sbr.rel (0) target = $region13
    $region12: #{tpu_custom_call.1} parent=1 // pred_region
      _
    $region13: #{tpu_custom_call.1} parent=1 // pred_fallthru
      _
    // Predicated region
    $region14: #{tpu_custom_call.1} parent=1 // pred_check
      _
    $region15: #{tpu_custom_call.1} parent=1 // pred_check_branch
      %28 = sbr.rel (0) target = $region17
    $region16: #{tpu_custom_call.1} parent=1 // pred_region
      %30 = dma.done [#allocation5], 10240
    $region17: #{tpu_custom_call.1} parent=1 // pred_fallthru
      _
    %p31 = scmp.eq.s32.totalorder 0, 0
    // Predicated region
    $region18: #{tpu_custom_call.1} parent=1 // pred_check
      %p32 = pneg %p31
    $region19: #{tpu_custom_call.1} parent=1 // pred_check_branch
      %34 = sbr.rel (%p32) target = $region21
    $region20: #{tpu_custom_call.1} parent=1 // pred_region
      %vm35 = vcmask 517120
      %36 = vst.msk [vmem:[#allocation2] sm:$0x3] %vm35, -inf
      %37 = vst.msk [vmem:[#allocation3] sm:$0x3] %vm35, 0.0
    $region21: #{tpu_custom_call.1} parent=1 // pred_fallthru
      _
    %v38 = vld [vmem:[#allocation4] sm:$0xff]
    %v39 = vld [vmem:[#allocation4 + $0x8] sm:$0xff]
    %v40 = vld [vmem:[#allocation4 + $0x10] sm:$0xff]
    %v41 = vld [vmem:[#allocation4 + $0x18] sm:$0xff]
    %v42 = vld [vmem:[#allocation4 + $0x20] sm:$0xff]
    %v43 = vld [vmem:[#allocation4 + $0x28] sm:$0xff]
    %v44 = vld [vmem:[#allocation4 + $0x30] sm:$0xff]
    %v45 = vld [vmem:[#allocation4 + $0x38] sm:$0xff]
    %v46 = vld [vmem:[#allocation4 + $0x40] sm:$0xff]
    %v47 = vld [vmem:[#allocation4 + $0x48] sm:$0xff]
    %v48 = vld [vmem:[#allocation4 + $0x50] sm:$0xff]
    %v49 = vld [vmem:[#allocation4 + $0x58] sm:$0xff]
    %v50 = vld [vmem:[#allocation4 + $0x60] sm:$0xff]
    %v51 = vld [vmem:[#allocation4 + $0x68] sm:$0xff]
    %v52 = vld [vmem:[#allocation4 + $0x70] sm:$0xff]
    %v53 = vld [vmem:[#allocation4 + $0x78] sm:$0xff]
    %v54 = vld [vmem:[#allocation4 + $0x80] sm:$0xff]
    %v55 = vld [vmem:[#allocation4 + $0x88] sm:$0xff]
    %v56 = vld [vmem:[#allocation4 + $0x90] sm:$0xff]
    %v57 = vld [vmem:[#allocation4 + $0x98] sm:$0xff]
    %v58 = vld [vmem:[#allocation4 + $0xa0] sm:$0xff]
    %v59 = vld [vmem:[#allocation4 + $0xa8] sm:$0xff]
    %v60 = vld [vmem:[#allocation4 + $0xb0] sm:$0xff]
    %v61 = vld [vmem:[#allocation4 + $0xb8] sm:$0xff]
    %v62 = vld [vmem:[#allocation4 + $0xc0] sm:$0xff]
    %v63 = vld [vmem:[#allocation4 + $0xc8] sm:$0xff]
    %v64 = vld [vmem:[#allocation4 + $0xd0] sm:$0xff]
    %v65 = vld [vmem:[#allocation4 + $0xd8] sm:$0xff]
    %v66 = vld [vmem:[#allocation4 + $0xe0] sm:$0xff]
    %v67 = vld [vmem:[#allocation4 + $0xe8] sm:$0xff]
    %v68 = vld [vmem:[#allocation4 + $0xf0] sm:$0xff]
    %v69 = vld [vmem:[#allocation4 + $0xf8] sm:$0xff]
    %v70 = vld [vmem:[#allocation4 + $0x100] sm:$0xff]
    %v71 = vld [vmem:[#allocation4 + $0x108] sm:$0xff]
    %v72 = vld [vmem:[#allocation4 + $0x110] sm:$0xff]
    %v73 = vld [vmem:[#allocation4 + $0x118] sm:$0xff]
    %v74 = vld [vmem:[#allocation4 + $0x120] sm:$0xff]
    %v75 = vld [vmem:[#allocation4 + $0x128] sm:$0xff]
    %v76 = vld [vmem:[#allocation4 + $0x130] sm:$0xff]
    %v77 = vld [vmem:[#allocation4 + $0x138] sm:$0xff]
    %v78 = vld [vmem:[#allocation4 + $0x140] sm:$0xff]
    %v79 = vld [vmem:[#allocation4 + $0x148] sm:$0xff]
    %v80 = vld [vmem:[#allocation4 + $0x150] sm:$0xff]
    %v81 = vld [vmem:[#allocation4 + $0x158] sm:$0xff]
    %v82 = vld [vmem:[#allocation4 + $0x160] sm:$0xff]
    %v83 = vld [vmem:[#allocation4 + $0x168] sm:$0xff]
    %v84 = vld [vmem:[#allocation4 + $0x170] sm:$0xff]
    %v85 = vld [vmem:[#allocation4 + $0x178] sm:$0xff]
    %v86 = vld [vmem:[#allocation4 + $0x180] sm:$0xff]
    %v87 = vld [vmem:[#allocation4 + $0x188] sm:$0xff]
    %v88 = vld [vmem:[#allocation4 + $0x190] sm:$0xff]
    %v89 = vld [vmem:[#allocation4 + $0x198] sm:$0xff]
    %v90 = vld [vmem:[#allocation4 + $0x1a0] sm:$0xff]
    %v91 = vld [vmem:[#allocation4 + $0x1a8] sm:$0xff]
    %v92 = vld [vmem:[#allocation4 + $0x1b0] sm:$0xff]
    %v93 = vld [vmem:[#allocation4 + $0x1b8] sm:$0xff]
    %v94 = vld [vmem:[#allocation4 + $0x1c0] sm:$0xff]
    %v95 = vld [vmem:[#allocation4 + $0x1c8] sm:$0xff]
    %v96 = vld [vmem:[#allocation4 + $0x1d0] sm:$0xff]
    %v97 = vld [vmem:[#allocation4 + $0x1d8] sm:$0xff]
    %v98 = vld [vmem:[#allocation4 + $0x1e0] sm:$0xff]
    %v99 = vld [vmem:[#allocation4 + $0x1e8] sm:$0xff]
    %v100 = vld [vmem:[#allocation4 + $0x1f0] sm:$0xff]
    %v101 = vld [vmem:[#allocation4 + $0x1f8] sm:$0xff]
    %v102 = vld [vmem:[#allocation4 + $0x200] sm:$0xff]
    %v103 = vld [vmem:[#allocation4 + $0x208] sm:$0xff]
    %v104 = vld [vmem:[#allocation4 + $0x210] sm:$0xff]
    %v105 = vld [vmem:[#allocation4 + $0x218] sm:$0xff]
    %v106 = vld [vmem:[#allocation4 + $0x220] sm:$0xff]
    %v107 = vld [vmem:[#allocation4 + $0x228] sm:$0xff]
    %v108 = vld [vmem:[#allocation4 + $0x230] sm:$0xff]
    %v109 = vld [vmem:[#allocation4 + $0x238] sm:$0xff]
    %v110 = vld [vmem:[#allocation4 + $0x240] sm:$0xff]
    %v111 = vld [vmem:[#allocation4 + $0x248] sm:$0xff]
    %v112 = vld [vmem:[#allocation4 + $0x250] sm:$0xff]
    %v113 = vld [vmem:[#allocation4 + $0x258] sm:$0xff]
    %v114 = vld [vmem:[#allocation4 + $0x260] sm:$0xff]
    %v115 = vld [vmem:[#allocation4 + $0x268] sm:$0xff]
    %v116 = vld [vmem:[#allocation4 + $0x270] sm:$0xff]
    %v117 = vld [vmem:[#allocation4 + $0x278] sm:$0xff]
    %v118 = vld [vmem:[#allocation2] sm:$0x3]
    %v119 = vmax.f32 %v38, %v39
    %v120 = vmax.f32 %v119, %v40
    %v121 = vmax.f32 %v120, %v41
    %vm122 = vcmask 523264
    %v123 = vsel %vm122, %v42, -inf
    %v124 = vmax.f32 %v121, %v123
    %125 = vmax.xlane.f32.xlu0 %v124
    %v126 = vpop.xlane.xlu0 %125
    %v127 = vmax.f32 %v43, %v44
    %v128 = vmax.f32 %v127, %v45
    %v129 = vmax.f32 %v128, %v46
    %v130 = vsel %vm122, %v47, -inf
    %v131 = vmax.f32 %v129, %v130
    %132 = vmax.xlane.f32.xlu0 %v131
    %v133 = vpop.xlane.xlu0 %132
    %v134 = vmax.f32 %v48, %v49
    %v135 = vmax.f32 %v134, %v50
    %v136 = vmax.f32 %v135, %v51
    %v137 = vsel %vm122, %v52, -inf
    %v138 = vmax.f32 %v136, %v137
    %139 = vmax.xlane.f32.xlu0 %v138
    %v140 = vpop.xlane.xlu0 %139
    %v141 = vmax.f32 %v53, %v54
    %v142 = vmax.f32 %v141, %v55
    %v143 = vmax.f32 %v142, %v56
    %v144 = vsel %vm122, %v57, -inf
    %v145 = vmax.f32 %v143, %v144
    %146 = vmax.xlane.f32.xlu0 %v145
    %v147 = vpop.xlane.xlu0 %146
    %v148 = vmax.f32 %v58, %v59
    %v149 = vmax.f32 %v148, %v60
    %v150 = vmax.f32 %v149, %v61
    %v151 = vsel %vm122, %v62, -inf
    %v152 = vmax.f32 %v150, %v151
    %153 = vmax.xlane.f32.xlu0 %v152
    %v154 = vpop.xlane.xlu0 %153
    %v155 = vmax.f32 %v63, %v64
    %v156 = vmax.f32 %v155, %v65
    %v157 = vmax.f32 %v156, %v66
    %v158 = vsel %vm122, %v67, -inf
    %v159 = vmax.f32 %v157, %v158
    %160 = vmax.xlane.f32.xlu0 %v159
    %v161 = vpop.xlane.xlu0 %160
    %v162 = vmax.f32 %v68, %v69
    %v163 = vmax.f32 %v162, %v70
    %v164 = vmax.f32 %v163, %v71
    %v165 = vsel %vm122, %v72, -inf
    %v166 = vmax.f32 %v164, %v165
    %167 = vmax.xlane.f32.xlu0 %v166
    %v168 = vpop.xlane.xlu0 %167
    %v169 = vmax.f32 %v73, %v74
    %v170 = vmax.f32 %v169, %v75
    %v171 = vmax.f32 %v170, %v76
    %v172 = vsel %vm122, %v77, -inf
    %v173 = vmax.f32 %v171, %v172
    %174 = vmax.xlane.f32.xlu0 %v173
    %v175 = vpop.xlane.xlu0 %174
    %v176 = vmax.f32 %v78, %v79
    %v177 = vmax.f32 %v176, %v80
    %v178 = vmax.f32 %v177, %v81
    %v179 = vsel %vm122, %v82, -inf
    %v180 = vmax.f32 %v178, %v179
    %181 = vmax.xlane.f32.xlu0 %v180
    %v182 = vpop.xlane.xlu0 %181
    %v183 = vmax.f32 %v83, %v84
    %v184 = vmax.f32 %v183, %v85
    %v185 = vmax.f32 %v184, %v86
    %v186 = vsel %vm122, %v87, -inf
    %v187 = vmax.f32 %v185, %v186
    %188 = vmax.xlane.f32.xlu0 %v187
    %v189 = vpop.xlane.xlu0 %188
    %v190 = vmax.f32 %v88, %v89
    %v191 = vmax.f32 %v190, %v90
    %v192 = vmax.f32 %v191, %v91
    %v193 = vsel %vm122, %v92, -inf
    %v194 = vmax.f32 %v192, %v193
    %195 = vmax.xlane.f32.xlu0 %v194
    %v196 = vpop.xlane.xlu0 %195
    %v197 = vmax.f32 %v93, %v94
    %v198 = vmax.f32 %v197, %v95
    %v199 = vmax.f32 %v198, %v96
    %v200 = vsel %vm122, %v97, -inf
    %v201 = vmax.f32 %v199, %v200
    %202 = vmax.xlane.f32.xlu0 %v201
    %v203 = vpop.xlane.xlu0 %202
    %v204 = vmax.f32 %v98, %v99
    %v205 = vmax.f32 %v204, %v100
    %v206 = vmax.f32 %v205, %v101
    %v207 = vsel %vm122, %v102, -inf
    %v208 = vmax.f32 %v206, %v207
    %209 = vmax.xlane.f32.xlu0 %v208
    %v210 = vpop.xlane.xlu0 %209
    %v211 = vmax.f32 %v103, %v104
    %v212 = vmax.f32 %v211, %v105
    %v213 = vmax.f32 %v212, %v106
    %v214 = vsel %vm122, %v107, -inf
    %v215 = vmax.f32 %v213, %v214
    %216 = vmax.xlane.f32.xlu0 %v215
    %v217 = vpop.xlane.xlu0 %216
    %v218 = vmax.f32 %v108, %v109
    %v219 = vmax.f32 %v218, %v110
    %v220 = vmax.f32 %v219, %v111
    %v221 = vsel %vm122, %v112, -inf
    %v222 = vmax.f32 %v220, %v221
    %223 = vmax.xlane.f32.xlu0 %v222
    %v224 = vpop.xlane.xlu0 %223
    %v225 = vmax.f32 %v113, %v114
    %v226 = vmax.f32 %v225, %v115
    %v227 = vmax.f32 %v226, %v116
    %v228 = vsel %vm122, %v117, -inf
    %v229 = vmax.f32 %v227, %v228
    %230 = vmax.xlane.f32.xlu0 %v229
    %v231 = vpop.xlane.xlu0 %230
    %v248 = vlaneseq
    %v249 = vand.u32 %v248, 127
    %v250 = vperm.slane %v126, %v249
    %v251 = vadd.s32 %v249, 4294967288
    %v252 = vperm.slane %v133, %v251
    %vm253 = vcmask 130112
    %v254 = vsel %vm253, %v252, %v250
    %v255 = vadd.s32 %v249, 4294967280
    %v256 = vperm.slane %v140, %v255
    %vm257 = vcmask 195712
    %v258 = vsel %vm257, %v256, %v254
    %v259 = vadd.s32 %v249, 4294967272
    %v260 = vperm.slane %v147, %v259
    %vm261 = vcmask 261312
    %v262 = vsel %vm261, %v260, %v258
    %v263 = vadd.s32 %v249, 4294967264
    %v264 = vperm.slane %v154, %v263
    %vm265 = vcmask 326912
    %v266 = vsel %vm265, %v264, %v262
    %v267 = vadd.s32 %v249, 4294967256
    %v268 = vperm.slane %v161, %v267
    %vm269 = vcmask 392512
    %v270 = vsel %vm269, %v268, %v266
    %v271 = vadd.s32 %v249, 4294967248
    %v272 = vperm.slane %v168, %v271
    %vm273 = vcmask 458112
    %v274 = vsel %vm273, %v272, %v270
    %v275 = vadd.s32 %v249, 4294967240
    %v276 = vperm.slane %v175, %v275
    %vm277 = vcmask 523712
    %v278 = vsel %vm277, %v276, %v274
    %v279 = vperm.slane %v182, %v249
    %v280 = vperm.slane %v189, %v251
    %v281 = vsel %vm253, %v280, %v279
    %v282 = vperm.slane %v196, %v255
    %v283 = vsel %vm257, %v282, %v281
    %v284 = vperm.slane %v203, %v259
    %v285 = vsel %vm261, %v284, %v283
    %v286 = vperm.slane %v210, %v263
    %v287 = vsel %vm265, %v286, %v285
    %v288 = vperm.slane %v217, %v267
    %v289 = vsel %vm269, %v288, %v287
    %v290 = vperm.slane %v224, %v271
    %v291 = vsel %vm273, %v290, %v289
    %v292 = vperm.slane %v231, %v275
    %v293 = vsel %vm277, %v292, %v291
    %vm294 = vcmask 1041409
    %v295 = vsel %vm294, %v293, %v278
    %v297 = vmax.f32 %v118, %v295
    %vm298 = vcmask 517120
    %299 = vst.msk [vmem:[#allocation2] sm:$0x3] %vm298, %v297
    %v300 = vld [vmem:[#allocation3] sm:$0x3]
    %v301 = vadd.f32 %v38, %v39
    %v302 = vadd.f32 %v301, %v40
    %v303 = vadd.f32 %v302, %v41
    %v304 = vsel %vm122, %v42, 0.0
    %v305 = vadd.f32 %v303, %v304
    %306 = vadd.xlane.f32.xlu0 %v305
    %v307 = vpop.xlane.xlu0 %306
    %v308 = vadd.f32 %v43, %v44
    %v309 = vadd.f32 %v308, %v45
    %v310 = vadd.f32 %v309, %v46
    %v311 = vsel %vm122, %v47, 0.0
    %v312 = vadd.f32 %v310, %v311
    %313 = vadd.xlane.f32.xlu0 %v312
    %v314 = vpop.xlane.xlu0 %313
    %v315 = vadd.f32 %v48, %v49
    %v316 = vadd.f32 %v315, %v50
    %v317 = vadd.f32 %v316, %v51
    %v318 = vsel %vm122, %v52, 0.0
    %v319 = vadd.f32 %v317, %v318
    %320 = vadd.xlane.f32.xlu0 %v319
    %v321 = vpop.xlane.xlu0 %320
    %v322 = vadd.f32 %v53, %v54
    %v323 = vadd.f32 %v322, %v55
    %v324 = vadd.f32 %v323, %v56
    %v325 = vsel %vm122, %v57, 0.0
    %v326 = vadd.f32 %v324, %v325
    %327 = vadd.xlane.f32.xlu0 %v326
    %v328 = vpop.xlane.xlu0 %327
    %v329 = vadd.f32 %v58, %v59
    %v330 = vadd.f32 %v329, %v60
    %v331 = vadd.f32 %v330, %v61
    %v332 = vsel %vm122, %v62, 0.0
    %v333 = vadd.f32 %v331, %v332
    %334 = vadd.xlane.f32.xlu0 %v333
    %v335 = vpop.xlane.xlu0 %334
    %v336 = vadd.f32 %v63, %v64
    %v337 = vadd.f32 %v336, %v65
    %v338 = vadd.f32 %v337, %v66
    %v339 = vsel %vm122, %v67, 0.0
    %v340 = vadd.f32 %v338, %v339
    %341 = vadd.xlane.f32.xlu0 %v340
    %v342 = vpop.xlane.xlu0 %341
    %v343 = vadd.f32 %v68, %v69
    %v344 = vadd.f32 %v343, %v70
    %v345 = vadd.f32 %v344, %v71
    %v346 = vsel %vm122, %v72, 0.0
    %v347 = vadd.f32 %v345, %v346
    %348 = vadd.xlane.f32.xlu0 %v347
    %v349 = vpop.xlane.xlu0 %348
    %v350 = vadd.f32 %v73, %v74
    %v351 = vadd.f32 %v350, %v75
    %v352 = vadd.f32 %v351, %v76
    %v353 = vsel %vm122, %v77, 0.0
    %v354 = vadd.f32 %v352, %v353
    %355 = vadd.xlane.f32.xlu0 %v354
    %v356 = vpop.xlane.xlu0 %355
    %v357 = vadd.f32 %v78, %v79
    %v358 = vadd.f32 %v357, %v80
    %v359 = vadd.f32 %v358, %v81
    %v360 = vsel %vm122, %v82, 0.0
    %v361 = vadd.f32 %v359, %v360
    %362 = vadd.xlane.f32.xlu0 %v361
    %v363 = vpop.xlane.xlu0 %362
    %v364 = vadd.f32 %v83, %v84
    %v365 = vadd.f32 %v364, %v85
    %v366 = vadd.f32 %v365, %v86
    %v367 = vsel %vm122, %v87, 0.0
    %v368 = vadd.f32 %v366, %v367
    %369 = vadd.xlane.f32.xlu0 %v368
    %v370 = vpop.xlane.xlu0 %369
    %v371 = vadd.f32 %v88, %v89
    %v372 = vadd.f32 %v371, %v90
    %v373 = vadd.f32 %v372, %v91
    %v374 = vsel %vm122, %v92, 0.0
    %v375 = vadd.f32 %v373, %v374
    %376 = vadd.xlane.f32.xlu0 %v375
    %v377 = vpop.xlane.xlu0 %376
    %v378 = vadd.f32 %v93, %v94
    %v379 = vadd.f32 %v378, %v95
    %v380 = vadd.f32 %v379, %v96
    %v381 = vsel %vm122, %v97, 0.0
    %v382 = vadd.f32 %v380, %v381
    %383 = vadd.xlane.f32.xlu0 %v382
    %v384 = vpop.xlane.xlu0 %383
    %v385 = vadd.f32 %v98, %v99
    %v386 = vadd.f32 %v385, %v100
    %v387 = vadd.f32 %v386, %v101
    %v388 = vsel %vm122, %v102, 0.0
    %v389 = vadd.f32 %v387, %v388
    %390 = vadd.xlane.f32.xlu0 %v389
    %v391 = vpop.xlane.xlu0 %390
    %v392 = vadd.f32 %v103, %v104
    %v393 = vadd.f32 %v392, %v105
    %v394 = vadd.f32 %v393, %v106
    %v395 = vsel %vm122, %v107, 0.0
    %v396 = vadd.f32 %v394, %v395
    %397 = vadd.xlane.f32.xlu0 %v396
    %v398 = vpop.xlane.xlu0 %397
    %v399 = vadd.f32 %v108, %v109
    %v400 = vadd.f32 %v399, %v110
    %v401 = vadd.f32 %v400, %v111
    %v402 = vsel %vm122, %v112, 0.0
    %v403 = vadd.f32 %v401, %v402
    %404 = vadd.xlane.f32.xlu0 %v403
    %v405 = vpop.xlane.xlu0 %404
    %v406 = vadd.f32 %v113, %v114
    %v407 = vadd.f32 %v406, %v115
    %v408 = vadd.f32 %v407, %v116
    %v409 = vsel %vm122, %v117, 0.0
    %v410 = vadd.f32 %v408, %v409
    %411 = vadd.xlane.f32.xlu0 %v410
    %v412 = vpop.xlane.xlu0 %411
    %v429 = vperm.slane %v307, %v249
    %v430 = vperm.slane %v314, %v251
    %v431 = vsel %vm253, %v430, %v429
    %v432 = vperm.slane %v321, %v255
    %v433 = vsel %vm257, %v432, %v431
    %v434 = vperm.slane %v328, %v259
    %v435 = vsel %vm261, %v434, %v433
    %v436 = vperm.slane %v335, %v263
    %v437 = vsel %vm265, %v436, %v435
    %v438 = vperm.slane %v342, %v267
    %v439 = vsel %vm269, %v438, %v437
    %v440 = vperm.slane %v349, %v271
    %v441 = vsel %vm273, %v440, %v439
    %v442 = vperm.slane %v356, %v275
    %v443 = vsel %vm277, %v442, %v441
    %v444 = vperm.slane %v363, %v249
    %v445 = vperm.slane %v370, %v251
    %v446 = vsel %vm253, %v445, %v444
    %v447 = vperm.slane %v377, %v255
    %v448 = vsel %vm257, %v447, %v446
    %v449 = vperm.slane %v384, %v259
    %v450 = vsel %vm261, %v449, %v448
    %v451 = vperm.slane %v391, %v263
    %v452 = vsel %vm265, %v451, %v450
    %v453 = vperm.slane %v398, %v267
    %v454 = vsel %vm269, %v453, %v452
    %v455 = vperm.slane %v405, %v271
    %v456 = vsel %vm273, %v455, %v454
    %v457 = vperm.slane %v412, %v275
    %v458 = vsel %vm277, %v457, %v456
    %v459 = vsel %vm294, %v458, %v443
    %v461 = vadd.f32 %v300, %v459
    %462 = vst.msk [vmem:[#allocation3] sm:$0x3] %vm298, %v461
    // Predicated region
    $region22: #{tpu_custom_call.1} parent=1 // pred_check
      %p463 = pneg %p31
    $region23: #{tpu_custom_call.1} parent=1 // pred_check_branch
      %465 = sbr.rel (%p463) target = $region25
    $region24: #{tpu_custom_call.1} parent=1 // pred_region
      %v466 = vld [vmem:[%s1] sm:$0xff]
      %v467 = vld [vmem:[%s1 + $0x8] sm:$0xff]
      %v468 = vld [vmem:[%s1 + $0x10] sm:$0xff]
      %v469 = vld [vmem:[%s1 + $0x18] sm:$0xff]
      %v470 = vld [vmem:[%s1 + $0x20] sm:$0xff]
      %v471 = vld [vmem:[%s1 + $0x28] sm:$0xff]
      %v472 = vld [vmem:[%s1 + $0x30] sm:$0xff]
      %v473 = vld [vmem:[%s1 + $0x38] sm:$0xff]
      %v474 = vld [vmem:[%s2] sm:$0xf]
      %v475 = vld [vmem:[#allocation3] sm:$0x3]
      %v476 = vmul.f32 %v475, 0.0017361111
      %v477 = vld [vmem:[#allocation2] sm:$0x3]
      %v479 = vsel %vm122, %v476, 0
      %481 = vmatpush.msra.mxu0 0.0
      %482 = vmatpush.msra.mxu0 0.0
      %483 = vmatpush.msra.mxu0 0.0
      %484 = vmatpush.msra.mxu0 0.0
      %485 = vmatpush.msra.mxu0 0.0
      %486 = vmatpush.msra.mxu0 0.0
      %487 = vmatpush.msra.mxu0 0.0
      %488 = vmatpush.msra.mxu0 0.0
      %489 = vmatpush.msra.mxu0 %v473
      %490 = vmatpush.msra.mxu0 %v472
      %491 = vmatpush.msra.mxu0 %v471
      %492 = vmatpush.msra.mxu0 %v470
      %493 = vmatpush.msra.mxu0 %v469
      %494 = vmatpush.msra.mxu0 %v468
      %495 = vmatpush.msra.mxu0 %v467
      %496 = vmatpush.msra.mxu0 %v466
      %497 = vmatmul.f32.gmra.mxu0 %v479
      %v498 = vpop.f32.mrf.mxu0
      %v499 = vadd.f32 0.0, %v498
      %500 = vdwg.mxu0
      %v501 = vmax.f32 %v499, 0.0
      %v503 = vsel %vm122, %v477, 0
      %505 = vmatpush.msra.mxu0 0.0
      %506 = vmatpush.msra.mxu0 0.0
      %507 = vmatpush.msra.mxu0 0.0
      %508 = vmatpush.msra.mxu0 0.0
      %509 = vmatpush.msra.mxu0 0.0
      %510 = vmatpush.msra.mxu0 0.0
      %511 = vmatpush.msra.mxu0 0.0
      %512 = vmatpush.msra.mxu0 0.0
      %513 = vmatpush.msra.mxu0 %v473
      %514 = vmatpush.msra.mxu0 %v472
      %515 = vmatpush.msra.mxu0 %v471
      %516 = vmatpush.msra.mxu0 %v470
      %517 = vmatpush.msra.mxu0 %v469
      %518 = vmatpush.msra.mxu0 %v468
      %519 = vmatpush.msra.mxu0 %v467
      %520 = vmatpush.msra.mxu0 %v466
      %521 = vmatmul.f32.gmra.mxu0 %v503
      %v522 = vpop.f32.mrf.mxu0
      %v523 = vadd.f32 0.0, %v522
      %524 = vdwg.mxu0
      %v525 = vmax.f32 %v523, 0.0
      %vm526 = vcmask 31744
      %v528 = vsel %vm526, %v525, 0
      %vm530 = vcmask 1043456
      %v532 = vsel %vm530, %v474, 0
      %534 = vmatpush.msra.mxu0 0.0
      %535 = vmatpush.msra.mxu0 0.0
      %536 = vmatpush.msra.mxu0 0.0
      %537 = vmatpush.msra.mxu0 0.0
      %538 = vmatpush.msra.mxu0 0.0
      %539 = vmatpush.msra.mxu0 0.0
      %540 = vmatpush.msra.mxu0 0.0
      %541 = vmatpush.msra.mxu0 0.0
      %542 = vmatpush.msra.mxu0 0.0
      %543 = vmatpush.msra.mxu0 0.0
      %544 = vmatpush.msra.mxu0 0.0
      %545 = vmatpush.msra.mxu0 0.0
      %546 = vmatpush.msra.mxu0 0.0
      %547 = vmatpush.msra.mxu0 0.0
      %548 = vmatpush.msra.mxu0 0.0
      %549 = vmatpush.msra.mxu0 %v532
      %550 = vmatmul.f32.gmra.mxu0 %v528
      %v551 = vpop.f32.mrf.mxu0
      %v552 = vadd.f32 0.0, %v551
      %553 = vdwg.mxu0
      %v555 = vsel %vm526, %v501, 0
      %557 = vmatpush.msra.mxu0 0.0
      %558 = vmatpush.msra.mxu0 0.0
      %559 = vmatpush.msra.mxu0 0.0
      %560 = vmatpush.msra.mxu0 0.0
      %561 = vmatpush.msra.mxu0 0.0
      %562 = vmatpush.msra.mxu0 0.0
      %563 = vmatpush.msra.mxu0 0.0
      %564 = vmatpush.msra.mxu0 0.0
      %565 = vmatpush.msra.mxu0 0.0
      %566 = vmatpush.msra.mxu0 0.0
      %567 = vmatpush.msra.mxu0 0.0
      %568 = vmatpush.msra.mxu0 0.0
      %569 = vmatpush.msra.mxu0 0.0
      %570 = vmatpush.msra.mxu0 0.0
      %571 = vmatpush.msra.mxu0 0.0
      %572 = vmatpush.msra.mxu0 %v532
      %573 = vmatmul.f32.gmra.mxu0 %v555
      %v574 = vpop.f32.mrf.mxu0
      %v575 = vadd.f32 %v552, %v574
      %576 = vdwg.mxu0
      %v577 = vxor.u32 %v575, 2147483648
      %v578 = vmul.f32 %v577, 1.442695
      %v579 = vpow.pop %v578
      %v580 = vadd.f32 %v579, 1.0
      %v581 = vrcp.pop %v580
      %v582 = vmul.f32 %v580, %v581
      %v583 = vsub.f32 1.0, %v582
      %v584 = vmul.f32 %v581, %v583
      %v585 = vadd.f32 %v581, %v584
      %vm586 = vweird.f32 %v580
      %vm587 = vweird.f32 %v581
      %vm588 = vmor %vm586, %vm587
      %v589 = vsel %vm588, %v581, %v585
      %v590 = vand.u32 2147483647, %v580
      %vm591 = vcmp.eq.f32.partialorder %v590, 8.507059e+37
      %v592 = vand.u32 %v580, 2147483648
      %v593 = vor.u32 1.1754944e-38, %v592
      %v594 = vsel %vm591, %v593, %v589
      %v595 = vmul.f32 1.0, %v594
      %v597 = vrot.slane %v595, 1
      %vm599 = vcmask 516096
      %600 = vst.msk [vmem:[#allocation7] sm:$0x1] %vm599, %v595
      %601 = vst.msk [vmem:[#allocation7 + $0x1] sm:$0x1] %vm599, %v597
    $region25: #{tpu_custom_call.1} parent=1 // pred_fallthru
      _
    // Predicated region
    $region26: #{tpu_custom_call.1} parent=1 // pred_check
      _
    $region27: #{tpu_custom_call.1} parent=1 // pred_check_branch
      %603 = sbr.rel (0) target = $region29
    $region28: #{tpu_custom_call.1} parent=1 // pred_region
      %605 = vsyncadd [#allocation6], 0
      %s606 = sshll.u32 [#allocation7], 4
      %s607 = int_to_ptr.vmem [resolvable:$true] %s606
      %s608 = sshll.u32 %s3, 4
      %s609 = int_to_ptr.hbm [resolvable:$true] %s608
      %614 = dma.vmem_to_hbm [thread:$0]  %s607, 32, %s609, [#allocation6], 16, 16, 1
    $region29: #{tpu_custom_call.1} parent=1 // pred_fallthru
      _
    // Predicated region
    $region30: #{tpu_custom_call.1} parent=1 // pred_check
      _
    $region31: #{tpu_custom_call.1} parent=1 // pred_check_branch
      %616 = sbr.rel (0) target = $region33
    $region32: #{tpu_custom_call.1} parent=1 // pred_region
      %618 = dma.done [#allocation6], 32
    $region33: #{tpu_custom_call.1} parent=1 // pred_fallthru
      _
    %619 = vsyncpa [#allocation5], 1
    %620 = vsyncpa [#allocation6], 1

</llo_original>
